<compile_context>
chip_gen: v6e
topology: v6e:2x2x1
jax: 0.10.0
libtpu: 0.0.40
codegen_flags: <defaults>
</compile_context>

<pallas_src>
import functools

import jax
import jax.numpy as jnp
from jax import lax
from jax.experimental import pallas as pl
from jax.experimental.pallas import tpu as pltpu


def _round_up(x, m):
    return (x + m - 1) // m * m


def _temporal_block_kernel(x_ref, w1_ref, b1_ref, w2_ref, b2_ref, *rest,
                           kernel_size, dilation, pad, use_downsample,
                           update_carry):
    """One (batch-block, L-tile) step of the fused TCN block.

    x_ref  : [TB, TL, Cin_p]     bf16 input tile (channels-last, lane-dense)
    w1_ref : [K*Cin_p, Cout_p]   bf16 folded conv1 taps (weight-norm already applied)
    b1_ref : [1, Cout_p]         f32
    w2_ref : [K*Cout_p, Cout_p]  bf16 folded conv2 taps
    b2_ref : [1, Cout_p]         f32
    (wd_ref [Cin_p, Cout_p] bf16, bd_ref [1, Cout_p] f32)  -- only if downsample
    o_ref  : [TB, TL, Cout_p]    f32 output tile
    xc_ref : [TB, pad, Cin_p]    bf16 carry: last `pad` x rows of previous tile
    hc_ref : [TB, pad, Cout_p]   bf16 carry: last `pad` h1 rows of previous tile
    """
    if use_downsample:
        wd_ref, bd_ref, o_ref, xc_ref, hc_ref = rest
    else:
        o_ref, xc_ref, hc_ref = rest
        wd_ref = bd_ref = None

    K, d = kernel_size, dilation
    TB, TL, Cin_p = x_ref.shape
    Cout_p = w1_ref.shape[1]
    qi = pl.program_id(1)                      # L-tile index (sequential axis)

    if pad > 0:
        @pl.when(qi == 0)
        def _init_carries():                   # causal left zero-pad, per batch block
            xc_ref[...] = jnp.zeros_like(xc_ref)
            hc_ref[...] = jnp.zeros_like(hc_ref)

    x = x_ref[...]                             # [TB, TL, Cin_p] bf16
    x_ext = jnp.concatenate([xc_ref[...], x], axis=1) if pad > 0 else x

    # ---- conv1: K dilated taps folded into one MXU matmul ----
    taps1 = [x_ext[:, k * d:k * d + TL, :] for k in range(K)]
    a1 = jnp.concatenate(taps1, axis=-1) if K > 1 else taps1[0]
    acc1 = jnp.dot(a1.reshape(TB * TL, K * Cin_p), w1_ref[...],
                   preferred_element_type=jnp.float32)
    h1 = jnp.maximum(acc1.reshape(TB, TL, Cout_p) + b1_ref[...][None], 0.0)
    # TODO(synk): dropout1 is identity (eval / inference mode)

    h1_b = h1.astype(jnp.bfloat16)
    h1_ext = jnp.concatenate([hc_ref[...], h1_b], axis=1) if pad > 0 else h1_b

    if update_carry:                           # feed the next (causal) L tile
        xc_ref[...] = x[:, TL - pad:, :]
        hc_ref[...] = h1_b[:, TL - pad:, :]

    # ---- conv2 ----
    taps2 = [h1_ext[:, k * d:k * d + TL, :] for k in range(K)]
    a2 = jnp.concatenate(taps2, axis=-1) if K > 1 else taps2[0]
    acc2 = jnp.dot(a2.reshape(TB * TL, K * Cout_p), w2_ref[...],
                   preferred_element_type=jnp.float32)
    h2 = jnp.maximum(acc2.reshape(TB, TL, Cout_p) + b2_ref[...][None], 0.0)
    # TODO(synk): dropout2 is identity (eval / inference mode)

    # ---- residual + final ReLU ----
    if use_downsample:
        res = jnp.dot(x.reshape(TB * TL, Cin_p), wd_ref[...],
                      preferred_element_type=jnp.float32)
        res = res.reshape(TB, TL, Cout_p) + bd_ref[...][None]
    else:                                      # n_inputs == n_outputs: identity residual
        res = x.astype(jnp.float32)

    o_ref[...] = jnp.maximum(h2 + res, 0.0).astype(o_ref.dtype)


def temporal_block_forward(x_ncl, w1, b1, w2, b2, wd, bd, *,
                           kernel_size, dilation, max_seq_tile=512):
    """x_ncl: [B, Cin, L] (PyTorch NCL). Conv weights in PyTorch [Cout, Cin, K] layout."""
    B, Cin, L = x_ncl.shape
    Cout = w1.shape[0]
    K, d = kernel_size, dilation
    pad = (K - 1) * d
    use_downsample = wd is not None
    if not use_downsample:
        assert Cin == Cout, "identity residual requires n_inputs == n_outputs"

    # lane-dense channel padding & L tiling (TL multiple of 8, TL >= pad)
    Cin_p = _round_up(Cin, 128)
    Cout_p = _round_up(Cout, 128)
    TL = _round_up(max(min(max_seq_tile, L), pad, 8), 8)
    Lp = _round_up(L, TL)
    nl = Lp // TL
    TB = 1

    # glue: NCL -> NLC, zero-pad channels / seq tail, bf16 matmul operands.
    # TODO(synk): in a stacked TCN keep activations channels-last (NLC) across
    # blocks so these transposes are not paid per block.
    x_blc = jnp.transpose(x_ncl, (0, 2, 1))
    x_p = jnp.pad(x_blc, ((0, 0), (0, Lp - L), (0, Cin_p - Cin))).astype(jnp.bfloat16)

    def fold_taps(w, cin, cin_p):              # [Cout, cin, K] -> [K*cin_p, Cout_p]
        wk = jnp.transpose(w, (2, 1, 0))
        wk = jnp.pad(wk, ((0, 0), (0, cin_p - cin), (0, Cout_p - Cout)))
        return wk.reshape(K * cin_p, Cout_p).astype(jnp.bfloat16)

    def pad_bias(b):
        return jnp.pad(b.reshape(1, Cout), ((0, 0), (0, Cout_p - Cout))).astype(jnp.float32)

    w1_f, w2_f = fold_taps(w1, Cin, Cin_p), fold_taps(w2, Cout, Cout_p)
    b1_p, b2_p = pad_bias(b1), pad_bias(b2)

    const2d = lambda shape: pl.BlockSpec(shape, lambda b, q: (0, 0))
    args = [x_p, w1_f, b1_p, w2_f, b2_p]
    in_specs = [pl.BlockSpec((TB, TL, Cin_p), lambda b, q: (b, q, 0)),
                const2d((K * Cin_p, Cout_p)), const2d((1, Cout_p)),
                const2d((K * Cout_p, Cout_p)), const2d((1, Cout_p))]
    if use_downsample:
        wd_m = jnp.pad(jnp.transpose(wd[:, :, 0], (1, 0)),
                       ((0, Cin_p - Cin), (0, Cout_p - Cout))).astype(jnp.bfloat16)
        args += [wd_m, pad_bias(bd)]
        in_specs += [const2d((Cin_p, Cout_p)), const2d((1, Cout_p))]

    pad_c = max(pad, 1)
    update_carry = (pad > 0) and (nl > 1)

    # VMEM budget: double-buffered x/out tiles + resident weights + carries + live values.
    bf16, f32 = 2, 4
    wts = ((K * Cin_p + K * Cout_p + (Cin_p if use_downsample else 0)) * Cout_p * bf16
           + (3 if use_downsample else 2) * Cout_p * f32)
    est = (2 * TB * TL * Cin_p * bf16 + 2 * TB * TL * Cout_p * f32 + 2 * wts
           + TB * pad_c * (Cin_p + Cout_p) * bf16
           + TB * TL * K * (Cin_p + Cout_p) * bf16 + 4 * TB * TL * Cout_p * f32)
    vmem_limit = int(min(48 * 2**20, max(2 * est, 8 * 2**20)))

    flops = 2 * B * Lp * (K * Cin_p * Cout_p + K * Cout_p * Cout_p
                          + (Cin_p * Cout_p if use_downsample else 0))
    bytes_accessed = (x_p.size * bf16 + B * Lp * Cout_p * f32
                      + (w1_f.size + w2_f.size) * bf16)

    kernel = functools.partial(_temporal_block_kernel, kernel_size=K, dilation=d,
                               pad=pad, use_downsample=use_downsample,
                               update_carry=update_carry)

    out = pl.pallas_call(
        kernel,
        out_shape=jax.ShapeDtypeStruct((B, Lp, Cout_p), jnp.float32),
        grid_spec=pltpu.PrefetchScalarGridSpec(
            num_scalar_prefetch=0,
            grid=(B // TB, nl),
            in_specs=in_specs,
            out_specs=pl.BlockSpec((TB, TL, Cout_p), lambda b, q: (b, q, 0)),
            scratch_shapes=[pltpu.VMEM((TB, pad_c, Cin_p), jnp.bfloat16),
                            pltpu.VMEM((TB, pad_c, Cout_p), jnp.bfloat16)]),
        compiler_params=pltpu.CompilerParams(
            dimension_semantics=("parallel", "arbitrary"),
            vmem_limit_bytes=vmem_limit),
        cost_estimate=pl.CostEstimate(flops=flops, transcendentals=0,
                                      bytes_accessed=bytes_accessed),
    )(*args)

    out = out[:, :L, :Cout]                    # drop channel / sequence padding
    return jnp.transpose(out, (0, 2, 1)).astype(x_ncl.dtype)


# ---------------------------------------------------------------------------
# Parameter construction + pure-JAX reference (mirrors the PyTorch module).
# ---------------------------------------------------------------------------
def make_weightnorm_conv_params(key, cin, cout, k):
    """weight_norm(Conv1d): w = g * v / ||v|| (norm over (in,k) per out channel).
    init_weights() draws v ~ N(0, 0.01); default weight_norm init sets g = ||v||."""
    kv, kb = jax.random.split(key)
    v = 0.01 * jax.random.normal(kv, (cout, cin, k), jnp.float32)
    norm = jnp.sqrt(jnp.sum(v * v, axis=(1, 2), keepdims=True))
    w = norm * v / norm                        # g = ||v||  ->  effective weight == v
    bound = 1.0 / jnp.sqrt(jnp.asarray(cin * k, jnp.float32))
    b = jax.random.uniform(kb, (cout,), jnp.float32, -bound, bound)
    return w, b


def ref_forward(x_ncl, w1, b1, w2, b2, wd, bd, *, kernel_size, dilation):
    """Pure-JAX f32 reference mirroring TemporalBlock.forward in eval mode."""
    pad = (kernel_size - 1) * dilation

    def dil_conv(x, w, b):
        y = lax.conv_general_dilated(x, w, window_strides=(1,), padding=[(pad, pad)],
                                     rhs_dilation=(dilation,),
                                     dimension_numbers=('NCH', 'OIH', 'NCH'))
        y = y[:, :, :y.shape[2] - pad]         # Chomp1d
        return y + b[None, :, None]

    h1 = jnp.maximum(dil_conv(x_ncl, w1, b1), 0.0)
    h2 = jnp.maximum(dil_conv(h1, w2, b2), 0.0)
    if wd is None:
        res = x_ncl
    else:
        res = lax.conv_general_dilated(x_ncl, wd, (1,), [(0, 0)],
                                       dimension_numbers=('NCH', 'OIH', 'NCH'))
        res = res + bd[None, :, None]
    return jnp.maximum(h2 + res, 0.0)


def _run_case(tag, B, Cin, Cout, L, K, dilation, max_seq_tile):
    key = jax.random.fold_in(jax.random.PRNGKey(0), tag)
    kx, k1, k2, kd = jax.random.split(key, 4)
    x = jax.random.normal(kx, (B, Cin, L), jnp.float32)
    w1, b1 = make_weightnorm_conv_params(k1, Cin, Cout, K)
    w2, b2 = make_weightnorm_conv_params(k2, Cout, Cout, K)
    if Cin != Cout:                            # downsample = Conv1d(Cin, Cout, 1)
        kdw, kdb = jax.random.split(kd)
        wd = 0.01 * jax.random.normal(kdw, (Cout, Cin, 1), jnp.float32)
        bound = 1.0 / jnp.sqrt(jnp.asarray(Cin, jnp.float32))
        bd = jax.random.uniform(kdb, (Cout,), jnp.float32, -bound, bound)
    else:
        wd = bd = None

    out = jax.block_until_ready(temporal_block_forward(
        x, w1, b1, w2, b2, wd, bd, kernel_size=K, dilation=dilation,
        max_seq_tile=max_seq_tile))
    ref = ref_forward(x, w1, b1, w2, b2, wd, bd, kernel_size=K, dilation=dilation)
    assert out.shape == (B, Cout, L), out.shape
    err = float(jnp.max(jnp.abs(out - ref)))
    assert err < 5e-2, f"case {tag}: max abs err {err}"   # bf16 matmul/residual tolerance
    return err


if __name__ == "__main__":
    # Primary small case: downsample residual (Cin != Cout), single L tile.
    _run_case(0, B=2, Cin=4, Cout=8, L=16, K=3, dilation=2, max_seq_tile=512)
    # Identity residual + causal carry across 3 sequential L tiles.
    _run_case(1, B=2, Cin=8, Cout=8, L=48, K=3, dilation=2, max_seq_tile=16)
    # Downsample residual + causal carry across 4 sequential L tiles.
    _run_case(2, B=2, Cin=4, Cout=8, L=64, K=3, dilation=2, max_seq_tile=16)
    print("KERNEL_OK")
</pallas_src>

<mosaic_0001>
module attributes {stable_mosaic.version = 11 : i64} {
  func.func @_temporal_block_kernel(%arg0: i32, %arg1: i32, %arg2: memref<1x16x128xbf16, #tpu.memory_space<vmem>>, %arg3: memref<384x128xbf16, #tpu.memory_space<vmem>>, %arg4: memref<1x128xf32, #tpu.memory_space<vmem>>, %arg5: memref<384x128xbf16, #tpu.memory_space<vmem>>, %arg6: memref<1x128xf32, #tpu.memory_space<vmem>>, %arg7: memref<128x128xbf16, #tpu.memory_space<vmem>>, %arg8: memref<1x128xf32, #tpu.memory_space<vmem>>, %arg9: memref<1x16x128xf32, #tpu.memory_space<vmem>>, %arg10: memref<1x4x128xbf16, #tpu.memory_space<vmem>>, %arg11: memref<1x4x128xbf16, #tpu.memory_space<vmem>>) attributes {dimension_semantics = [#tpu.dimension_semantics<parallel>, #tpu.dimension_semantics<arbitrary>], iteration_bounds = array<i64: 2, 1>, scalar_prefetch = 0 : i64, scratch_operands = 2 : i64, tpu.core_type = #tpu.core_type<tc>, window_params = [{transform_indices = @transform_0, window_bounds = array<i64: 1, 16, 128>}, {pipeline_mode = #tpu.pipeline_mode<synchronous>, transform_indices = @transform_1, window_bounds = array<i64: 384, 128>}, {pipeline_mode = #tpu.pipeline_mode<synchronous>, transform_indices = @transform_2, window_bounds = array<i64: 1, 128>}, {pipeline_mode = #tpu.pipeline_mode<synchronous>, transform_indices = @transform_3, window_bounds = array<i64: 384, 128>}, {pipeline_mode = #tpu.pipeline_mode<synchronous>, transform_indices = @transform_4, window_bounds = array<i64: 1, 128>}, {pipeline_mode = #tpu.pipeline_mode<synchronous>, transform_indices = @transform_5, window_bounds = array<i64: 128, 128>}, {pipeline_mode = #tpu.pipeline_mode<synchronous>, transform_indices = @transform_6, window_bounds = array<i64: 1, 128>}, {transform_indices = @transform_7, window_bounds = array<i64: 1, 16, 128>}]} {
    %c0_i32 = arith.constant 0 : i32
    %0 = arith.cmpi eq, %arg1, %c0_i32 : i32
    %1 = arith.extui %0 : i1 to i32
    %c0_i32_0 = arith.constant 0 : i32
    %2 = arith.cmpi ne, %1, %c0_i32_0 : i32
    scf.if %2 {
      %cst_29 = arith.constant 0.000000e+00 : bf16
      %49 = vector.broadcast %cst_29 : bf16 to vector<1x4x128xbf16>
      %c0_30 = arith.constant 0 : index
      %c0_31 = arith.constant 0 : index
      %c0_32 = arith.constant 0 : index
      %50 = vector.load %arg10[%c0_30, %c0_31, %c0_32] : memref<1x4x128xbf16, #tpu.memory_space<vmem>>, vector<1x4x128xbf16>
      tpu.vector_store %arg10[%c0_30, %c0_31, %c0_32], %49 {strides = array<i32>} : memref<1x4x128xbf16, #tpu.memory_space<vmem>>, vector<1x4x128xbf16>,
      %cst_33 = arith.constant 0.000000e+00 : bf16
      %51 = vector.broadcast %cst_33 : bf16 to vector<1x4x128xbf16>
      %c0_34 = arith.constant 0 : index
      %c0_35 = arith.constant 0 : index
      %c0_36 = arith.constant 0 : index
      %52 = vector.load %arg11[%c0_34, %c0_35, %c0_36] : memref<1x4x128xbf16, #tpu.memory_space<vmem>>, vector<1x4x128xbf16>
      tpu.vector_store %arg11[%c0_34, %c0_35, %c0_36], %51 {strides = array<i32>} : memref<1x4x128xbf16, #tpu.memory_space<vmem>>, vector<1x4x128xbf16>,
    } else {
    }
    %c0 = arith.constant 0 : index
    %c0_1 = arith.constant 0 : index
    %c0_2 = arith.constant 0 : index
    %3 = vector.load %arg2[%c0, %c0_1, %c0_2] : memref<1x16x128xbf16, #tpu.memory_space<vmem>>, vector<1x16x128xbf16>
    %c0_3 = arith.constant 0 : index
    %c0_4 = arith.constant 0 : index
    %c0_5 = arith.constant 0 : index
    %4 = vector.load %arg10[%c0_3, %c0_4, %c0_5] : memref<1x4x128xbf16, #tpu.memory_space<vmem>>, vector<1x4x128xbf16>
    %5 = tpu.concatenate %4, %3 in 1 : vector<1x4x128xbf16>, vector<1x16x128xbf16> -> vector<1x20x128xbf16>
    %6 = vector.extract_strided_slice %5 {offsets = [0, 0, 0], sizes = [1, 16, 128], strides = [1, 1, 1]} : vector<1x20x128xbf16> to vector<1x16x128xbf16>
    %7 = vector.extract_strided_slice %5 {offsets = [0, 2, 0], sizes = [1, 16, 128], strides = [1, 1, 1]} : vector<1x20x128xbf16> to vector<1x16x128xbf16>
    %8 = vector.extract_strided_slice %5 {offsets = [0, 4, 0], sizes = [1, 16, 128], strides = [1, 1, 1]} : vector<1x20x128xbf16> to vector<1x16x128xbf16>
    %9 = tpu.concatenate %6, %7, %8 in 2 : vector<1x16x128xbf16>, vector<1x16x128xbf16>, vector<1x16x128xbf16> -> vector<1x16x384xbf16>
    %10 = vector.shape_cast %9 : vector<1x16x384xbf16> to vector<16x384xbf16>
    %c0_6 = arith.constant 0 : index
    %c0_7 = arith.constant 0 : index
    %11 = vector.load %arg3[%c0_6, %c0_7] : memref<384x128xbf16, #tpu.memory_space<vmem>>, vector<384x128xbf16>
    %cst = arith.constant dense<0.000000e+00> : vector<16x128xf32>
    %12 = tpu.matmul %10, %11, %cst {dimension_numbers = #tpu.dot_dimension_numbers<[1], [0], [0], [1], [0, 0, 1, 1], [], []>} : vector<16x384xbf16>, vector<384x128xbf16>, vector<16x128xf32> -> vector<16x128xf32>
    %13 = vector.shape_cast %12 : vector<16x128xf32> to vector<1x16x128xf32>
    %c0_8 = arith.constant 0 : index
    %c0_9 = arith.constant 0 : index
    %14 = vector.load %arg4[%c0_8, %c0_9] : memref<1x128xf32, #tpu.memory_space<vmem>>, vector<1x128xf32>
    %15 = vector.shape_cast %14 : vector<1x128xf32> to vector<1x1x128xf32>
    %16 = vector.broadcast %15 : vector<1x1x128xf32> to vector<1x16x128xf32>
    %17 = arith.addf %13, %16 : vector<1x16x128xf32>
    %cst_10 = arith.constant 0.000000e+00 : f32
    %18 = vector.broadcast %cst_10 : f32 to vector<1x16x128xf32>
    %19 = arith.maximumf %17, %18 : vector<1x16x128xf32>
    %20 = arith.truncf %19 : vector<1x16x128xf32> to vector<1x16x128xbf16>
    %c0_11 = arith.constant 0 : index
    %c0_12 = arith.constant 0 : index
    %c0_13 = arith.constant 0 : index
    %21 = vector.load %arg11[%c0_11, %c0_12, %c0_13] : memref<1x4x128xbf16, #tpu.memory_space<vmem>>, vector<1x4x128xbf16>
    %22 = tpu.concatenate %21, %20 in 1 : vector<1x4x128xbf16>, vector<1x16x128xbf16> -> vector<1x20x128xbf16>
    %23 = vector.extract_strided_slice %22 {offsets = [0, 0, 0], sizes = [1, 16, 128], strides = [1, 1, 1]} : vector<1x20x128xbf16> to vector<1x16x128xbf16>
    %24 = vector.extract_strided_slice %22 {offsets = [0, 2, 0], sizes = [1, 16, 128], strides = [1, 1, 1]} : vector<1x20x128xbf16> to vector<1x16x128xbf16>
    %25 = vector.extract_strided_slice %22 {offsets = [0, 4, 0], sizes = [1, 16, 128], strides = [1, 1, 1]} : vector<1x20x128xbf16> to vector<1x16x128xbf16>
    %26 = tpu.concatenate %23, %24, %25 in 2 : vector<1x16x128xbf16>, vector<1x16x128xbf16>, vector<1x16x128xbf16> -> vector<1x16x384xbf16>
    %27 = vector.shape_cast %26 : vector<1x16x384xbf16> to vector<16x384xbf16>
    %c0_14 = arith.constant 0 : index
    %c0_15 = arith.constant 0 : index
    %28 = vector.load %arg5[%c0_14, %c0_15] : memref<384x128xbf16, #tpu.memory_space<vmem>>, vector<384x128xbf16>
    %cst_16 = arith.constant dense<0.000000e+00> : vector<16x128xf32>
    %29 = tpu.matmul %27, %28, %cst_16 {dimension_numbers = #tpu.dot_dimension_numbers<[1], [0], [0], [1], [0, 0, 1, 1], [], []>} : vector<16x384xbf16>, vector<384x128xbf16>, vector<16x128xf32> -> vector<16x128xf32>
    %30 = vector.shape_cast %29 : vector<16x128xf32> to vector<1x16x128xf32>
    %c0_17 = arith.constant 0 : index
    %c0_18 = arith.constant 0 : index
    %31 = vector.load %arg6[%c0_17, %c0_18] : memref<1x128xf32, #tpu.memory_space<vmem>>, vector<1x128xf32>
    %32 = vector.shape_cast %31 : vector<1x128xf32> to vector<1x1x128xf32>
    %33 = vector.broadcast %32 : vector<1x1x128xf32> to vector<1x16x128xf32>
    %34 = arith.addf %30, %33 : vector<1x16x128xf32>
    %cst_19 = arith.constant 0.000000e+00 : f32
    %35 = vector.broadcast %cst_19 : f32 to vector<1x16x128xf32>
    %36 = arith.maximumf %34, %35 : vector<1x16x128xf32>
    %37 = vector.shape_cast %3 : vector<1x16x128xbf16> to vector<16x128xbf16>
    %c0_20 = arith.constant 0 : index
    %c0_21 = arith.constant 0 : index
    %38 = vector.load %arg7[%c0_20, %c0_21] : memref<128x128xbf16, #tpu.memory_space<vmem>>, vector<128x128xbf16>
    %cst_22 = arith.constant dense<0.000000e+00> : vector<16x128xf32>
    %39 = tpu.matmul %37, %38, %cst_22 {dimension_numbers = #tpu.dot_dimension_numbers<[1], [0], [0], [1], [0, 0, 1, 1], [], []>} : vector<16x128xbf16>, vector<128x128xbf16>, vector<16x128xf32> -> vector<16x128xf32>
    %40 = vector.shape_cast %39 : vector<16x128xf32> to vector<1x16x128xf32>
    %c0_23 = arith.constant 0 : index
    %c0_24 = arith.constant 0 : index
    %41 = vector.load %arg8[%c0_23, %c0_24] : memref<1x128xf32, #tpu.memory_space<vmem>>, vector<1x128xf32>
    %42 = vector.shape_cast %41 : vector<1x128xf32> to vector<1x1x128xf32>
    %43 = vector.broadcast %42 : vector<1x1x128xf32> to vector<1x16x128xf32>
    %44 = arith.addf %40, %43 : vector<1x16x128xf32>
    %45 = arith.addf %36, %44 : vector<1x16x128xf32>
    %cst_25 = arith.constant 0.000000e+00 : f32
    %46 = vector.broadcast %cst_25 : f32 to vector<1x16x128xf32>
    %47 = arith.maximumf %45, %46 : vector<1x16x128xf32>
    %c0_26 = arith.constant 0 : index
    %c0_27 = arith.constant 0 : index
    %c0_28 = arith.constant 0 : index
    %48 = vector.load %arg9[%c0_26, %c0_27, %c0_28] : memref<1x16x128xf32, #tpu.memory_space<vmem>>, vector<1x16x128xf32>
    tpu.vector_store %arg9[%c0_26, %c0_27, %c0_28], %47 {strides = array<i32>} : memref<1x16x128xf32, #tpu.memory_space<vmem>>, vector<1x16x128xf32>,
    return
  }
  func.func @transform_0(%arg0: i32, %arg1: i32) -> (i32, i32, i32) {
    %c0_i32 = arith.constant 0 : i32
    %c0_i32_0 = arith.constant 0 : i32
    return %arg0, %arg1, %c0_i32 : i32, i32, i32
  }
  func.func @transform_1(%arg0: i32, %arg1: i32) -> (i32, i32) {
    %c0_i32 = arith.constant 0 : i32
    %c0_i32_0 = arith.constant 0 : i32
    %c0_i32_1 = arith.constant 0 : i32
    return %c0_i32, %c0_i32_0 : i32, i32
  }
  func.func @transform_2(%arg0: i32, %arg1: i32) -> (i32, i32) {
    %c0_i32 = arith.constant 0 : i32
    %c0_i32_0 = arith.constant 0 : i32
    %c0_i32_1 = arith.constant 0 : i32
    return %c0_i32, %c0_i32_0 : i32, i32
  }
  func.func @transform_3(%arg0: i32, %arg1: i32) -> (i32, i32) {
    %c0_i32 = arith.constant 0 : i32
    %c0_i32_0 = arith.constant 0 : i32
    %c0_i32_1 = arith.constant 0 : i32
    return %c0_i32, %c0_i32_0 : i32, i32
  }
  func.func @transform_4(%arg0: i32, %arg1: i32) -> (i32, i32) {
    %c0_i32 = arith.constant 0 : i32
    %c0_i32_0 = arith.constant 0 : i32
    %c0_i32_1 = arith.constant 0 : i32
    return %c0_i32, %c0_i32_0 : i32, i32
  }
  func.func @transform_5(%arg0: i32, %arg1: i32) -> (i32, i32) {
    %c0_i32 = arith.constant 0 : i32
    %c0_i32_0 = arith.constant 0 : i32
    %c0_i32_1 = arith.constant 0 : i32
    return %c0_i32, %c0_i32_0 : i32, i32
  }
  func.func @transform_6(%arg0: i32, %arg1: i32) -> (i32, i32) {
    %c0_i32 = arith.constant 0 : i32
    %c0_i32_0 = arith.constant 0 : i32
    %c0_i32_1 = arith.constant 0 : i32
    return %c0_i32, %c0_i32_0 : i32, i32
  }
  func.func @transform_7(%arg0: i32, %arg1: i32) -> (i32, i32, i32) {
    %c0_i32 = arith.constant 0 : i32
    %c0_i32_0 = arith.constant 0 : i32
    return %arg0, %arg1, %c0_i32 : i32, i32, i32
  }
}

</mosaic_0001>

<llo_original>
// kernel: tpu_custom_call.1
$region0: #{tpu_custom_call.1}
  #allocation0 [shape = 'u32[]', space=smem, size = 0x4, offset = 0x4, fixed_abs, tag = 'smem constant byte address 0x4 - core index']
  #allocation1 [shape = 'u32[144,128]{1,0:T(1,128)}', space=vmem, size = 0x12000, scoped, tag = 'internal scratch']
  #allocation2 [shape = 'bf16[1,4,128]{2,1,0:T(4,128)(2,1)}', space=vmem, size = 0x400, scoped, tag = 'scratch operand']
  #allocation3 [shape = 'bf16[1,4,128]{2,1,0:T(4,128)(2,1)}', space=vmem, size = 0x400, scoped, tag = 'scratch operand']
  %s0 = inlined_call_operand.hbm [shape: bf16[2,16,128], index: 0, kind: input, shape index: {}]
  %s1 = inlined_call_operand.hbm [shape: bf16[384,128], index: 1, kind: input, shape index: {}]
  %s2 = inlined_call_operand.vmem [shape: f32[1,128], index: 2, kind: input, shape index: {}]
  %s3 = inlined_call_operand.hbm [shape: bf16[384,128], index: 3, kind: input, shape index: {}]
  %s4 = inlined_call_operand.vmem [shape: f32[1,128], index: 4, kind: input, shape index: {}]
  %s5 = inlined_call_operand.hbm [shape: bf16[128,128], index: 5, kind: input, shape index: {}]
  %s6 = inlined_call_operand.vmem [shape: f32[1,128], index: 6, kind: input, shape index: {}]
  %s7 = inlined_call_operand.hbm [shape: f32[2,16,128], index: 7, kind: output, shape index: {}]
  %s8 = sld [smem:[#allocation0]]
  $region81: #{tpu_custom_call.1} parent=0
    _
  %s10 = ssub.s32 1, %s8
  %s11 = scalar_select 0, %s10, %s8
  $region1: #{tpu_custom_call.1} parent=0
    #allocation4 [shape = 'u8[8192]{0}', space=vmem, size = 0x2000, scoped, tag = 'input window, operand 0']
    #allocation5 [shape = 's32[2]{0}', space=sflag, size = 0x8, scoped, tag = 'scoped memory for tpu_custom_call.1']
    #allocation6 [shape = 's32[2]{0}', space=sflag, size = 0x8, scoped, tag = 'scoped memory for tpu_custom_call.1']
    #allocation7 [shape = 'u8[98304]{0}', space=vmem, size = 0x18000, scoped, tag = 'input window, operand 1, single buffered']
    #allocation8 [shape = 's32[1]{0}', space=sflag, size = 0x4, scoped, tag = 'scoped memory for tpu_custom_call.1']
    #allocation9 [shape = 'u8[98304]{0}', space=vmem, size = 0x18000, scoped, tag = 'input window, operand 3, single buffered']
    #allocation10 [shape = 'u8[32768]{0}', space=vmem, size = 0x8000, scoped, tag = 'input window, operand 5, single buffered']
    #allocation11 [shape = 's32[1]{0}', space=sflag, size = 0x4, scoped, tag = 'scoped memory for tpu_custom_call.1']
    #allocation12 [shape = 'u8[16384]{0}', space=vmem, size = 0x4000, scoped, tag = 'output window, operand 0']
    %12 = vsyncpa [#allocation5], 0
    %s13 = scalar_lea.sflag [#allocation5], 1
    %14 = vsyncpa %s13, 0
    %15 = vsyncpa [#allocation8], 0
    %16 = vsyncpa [#allocation11], 0
    %17 = vsyncpa [#allocation6], 0
    %s18 = scalar_lea.sflag [#allocation6], 1
    %19 = vsyncpa %s18, 0
    loop: start=0, step=1, limit=4
    $region2: #{tpu_custom_call.1} parent=1 // loop_pre_header
      _
    $region3: #{tpu_custom_call.1} parent=1 // loop_header
      %s21 = sphi 0, %s25
      %p22 = scmp.ge.s32.totalorder %s21, 4
      %s28 = sphi 0, %s40
      %s29 = sphi 0, %s36
      %s30 = sphi 0, %s28
      %s31 = sphi 0, %s29
      %s32 = sphi 0, %s30
      %s33 = sphi 0, %s31
      %s45 = sphi 0, %s47
      %s48 = sphi 0, %s45
      %s49 = sphi 0, %s48
      %s65 = sphi 0, %s49
      %s69 = sphi 0, %s69
      %s71 = sphi 0, %s69
      %s72 = sphi 0, %s71
      %s86 = sphi 0, %s72
      %s90 = sphi 0, %s90
      %s92 = sphi 0, %s90
      %s93 = sphi 0, %s92
      %s107 = sphi 0, %s93
      %s111 = sphi 0, %s111
      %s113 = sphi 0, %s111
      %s114 = sphi 0, %s113
      %s128 = sphi 0, %s114
      %s132 = sphi 0, %s132
      %s134 = sphi 0, %s132
      %s135 = sphi 0, %s134
      %s149 = sphi 0, %s135
      %s153 = sphi 0, %s153
      %s155 = sphi 0, %s153
      %s156 = sphi 0, %s155
      %s170 = sphi 0, %s156
      %s174 = sphi 0, %s174
      %s176 = sphi 0, %s174
      %s177 = sphi 0, %s176
      %s191 = sphi 0, %s177
      %s199 = sphi 0, %s201
      %s202 = sphi 0, %s199
      %s203 = sphi 0, %s202
      %s219 = sphi 0, %s203
    $region4: #{tpu_custom_call.1} parent=1 // loop_header_branch
      %24 = sbr.rel (%p22) target = $region8
    $region5: #{tpu_custom_call.1} parent=1 // loop_body
      %s26 = ssub.s32 %s21, 1
      %s27 = ssub.s32 %s21, 2
      %s34 = sadd.s32 1, %s29
      %p35 = scmp.ge.s32.totalorder %s34, 1
      %s36 = scalar_select %p35, 0, %s34
      %s37 = sadd.s32 1, %s28
      %s38 = scalar_select %p35, %s37, %s28
      %p39 = scmp.ge.s32.totalorder %s38, 2
      %s40 = scalar_select %p39, 0, %s38
      %s41 = ssub.s32 %s28, %s40
      %s42 = ssub.s32 %s29, %s36
      %s43 = sor.u32 %s41, %s42
      %p44 = scmp.eq.s32.totalorder %s43, 0
      %s46 = sadd.s32 %s45, 1
      %s47 = scalar_select %p44, %s45, %s46
      %p50 = pneg %p44
      %p51 = scmp.eq.s32.totalorder %s21, 1
      %p52 = por %p50, %p51
      %p53 = scmp.ne.s32.totalorder %s45, %s48
      %p54 = scmp.eq.s32.totalorder %s21, 0
      %p55 = por %p53, %p54
      %p56 = scmp.ne.s32.totalorder %s45, %s48
      %p57 = scmp.eq.s32.totalorder %s26, 1
      %p58 = por %p56, %p57
      %p59 = scmp.ne.s32.totalorder %s48, %s49
      %p60 = scmp.eq.s32.totalorder %s26, 0
      %p61 = por %p59, %p60
      %p62 = scmp.ne.s32.totalorder %s48, %s49
      %p63 = scmp.eq.s32.totalorder %s27, 1
      %p64 = por %p62, %p63
      %p66 = scmp.ne.s32.totalorder %s49, %s65
      %p67 = scmp.eq.s32.totalorder %s27, 0
      %p68 = por %p66, %p67
      %s70 = sadd.s32 %s69, 1
      %p73 = scmp.eq.s32.totalorder %s21, 1
      %p74 = scmp.ne.s32.totalorder %s69, %s71
      %p75 = scmp.eq.s32.totalorder %s21, 0
      %p76 = por %p74, %p75
      %p77 = scmp.ne.s32.totalorder %s69, %s71
      %p78 = scmp.eq.s32.totalorder %s26, 1
      %p79 = por %p77, %p78
      %p80 = scmp.ne.s32.totalorder %s71, %s72
      %p81 = scmp.eq.s32.totalorder %s26, 0
      %p82 = por %p80, %p81
      %p83 = scmp.ne.s32.totalorder %s71, %s72
      %p84 = scmp.eq.s32.totalorder %s27, 1
      %p85 = por %p83, %p84
      %p87 = scmp.ne.s32.totalorder %s72, %s86
      %p88 = scmp.eq.s32.totalorder %s27, 0
      %p89 = por %p87, %p88
      %s91 = sadd.s32 %s90, 1
      %p94 = scmp.eq.s32.totalorder %s21, 1
      %p95 = scmp.ne.s32.totalorder %s90, %s92
      %p96 = scmp.eq.s32.totalorder %s21, 0
      %p97 = por %p95, %p96
      %p98 = scmp.ne.s32.totalorder %s90, %s92
      %p99 = scmp.eq.s32.totalorder %s26, 1
      %p100 = por %p98, %p99
      %p101 = scmp.ne.s32.totalorder %s92, %s93
      %p102 = scmp.eq.s32.totalorder %s26, 0
      %p103 = por %p101, %p102
      %p104 = scmp.ne.s32.totalorder %s92, %s93
      %p105 = scmp.eq.s32.totalorder %s27, 1
      %p106 = por %p104, %p105
      %p108 = scmp.ne.s32.totalorder %s93, %s107
      %p109 = scmp.eq.s32.totalorder %s27, 0
      %p110 = por %p108, %p109
      %s112 = sadd.s32 %s111, 1
      %p115 = scmp.eq.s32.totalorder %s21, 1
      %p116 = scmp.ne.s32.totalorder %s111, %s113
      %p117 = scmp.eq.s32.totalorder %s21, 0
      %p118 = por %p116, %p117
      %p119 = scmp.ne.s32.totalorder %s111, %s113
      %p120 = scmp.eq.s32.totalorder %s26, 1
      %p121 = por %p119, %p120
      %p122 = scmp.ne.s32.totalorder %s113, %s114
      %p123 = scmp.eq.s32.totalorder %s26, 0
      %p124 = por %p122, %p123
      %p125 = scmp.ne.s32.totalorder %s113, %s114
      %p126 = scmp.eq.s32.totalorder %s27, 1
      %p127 = por %p125, %p126
      %p129 = scmp.ne.s32.totalorder %s114, %s128
      %p130 = scmp.eq.s32.totalorder %s27, 0
      %p131 = por %p129, %p130
      %s133 = sadd.s32 %s132, 1
      %p136 = scmp.eq.s32.totalorder %s21, 1
      %p137 = scmp.ne.s32.totalorder %s132, %s134
      %p138 = scmp.eq.s32.totalorder %s21, 0
      %p139 = por %p137, %p138
      %p140 = scmp.ne.s32.totalorder %s132, %s134
      %p141 = scmp.eq.s32.totalorder %s26, 1
      %p142 = por %p140, %p141
      %p143 = scmp.ne.s32.totalorder %s134, %s135
      %p144 = scmp.eq.s32.totalorder %s26, 0
      %p145 = por %p143, %p144
      %p146 = scmp.ne.s32.totalorder %s134, %s135
      %p147 = scmp.eq.s32.totalorder %s27, 1
      %p148 = por %p146, %p147
      %p150 = scmp.ne.s32.totalorder %s135, %s149
      %p151 = scmp.eq.s32.totalorder %s27, 0
      %p152 = por %p150, %p151
      %s154 = sadd.s32 %s153, 1
      %p157 = scmp.eq.s32.totalorder %s21, 1
      %p158 = scmp.ne.s32.totalorder %s153, %s155
      %p159 = scmp.eq.s32.totalorder %s21, 0
      %p160 = por %p158, %p159
      %p161 = scmp.ne.s32.totalorder %s153, %s155
      %p162 = scmp.eq.s32.totalorder %s26, 1
      %p163 = por %p161, %p162
      %p164 = scmp.ne.s32.totalorder %s155, %s156
      %p165 = scmp.eq.s32.totalorder %s26, 0
      %p166 = por %p164, %p165
      %p167 = scmp.ne.s32.totalorder %s155, %s156
      %p168 = scmp.eq.s32.totalorder %s27, 1
      %p169 = por %p167, %p168
      %p171 = scmp.ne.s32.totalorder %s156, %s170
      %p172 = scmp.eq.s32.totalorder %s27, 0
      %p173 = por %p171, %p172
      %s175 = sadd.s32 %s174, 1
      %p178 = scmp.eq.s32.totalorder %s21, 1
      %p179 = scmp.ne.s32.totalorder %s174, %s176
      %p180 = scmp.eq.s32.totalorder %s21, 0
      %p181 = por %p179, %p180
      %p182 = scmp.ne.s32.totalorder %s174, %s176
      %p183 = scmp.eq.s32.totalorder %s26, 1
      %p184 = por %p182, %p183
      %p185 = scmp.ne.s32.totalorder %s176, %s177
      %p186 = scmp.eq.s32.totalorder %s26, 0
      %p187 = por %p185, %p186
      %p188 = scmp.ne.s32.totalorder %s176, %s177
      %p189 = scmp.eq.s32.totalorder %s27, 1
      %p190 = por %p188, %p189
      %p192 = scmp.ne.s32.totalorder %s177, %s191
      %p193 = scmp.eq.s32.totalorder %s27, 0
      %p194 = por %p192, %p193
      %s195 = ssub.s32 %s28, %s40
      %s196 = ssub.s32 %s29, %s36
      %s197 = sor.u32 %s195, %s196
      %p198 = scmp.eq.s32.totalorder %s197, 0
      %s200 = sadd.s32 %s199, 1
      %s201 = scalar_select %p198, %s199, %s200
      %p204 = pneg %p198
      %p205 = scmp.eq.s32.totalorder %s21, 1
      %p206 = por %p204, %p205
      %p207 = scmp.ne.s32.totalorder %s199, %s202
      %p208 = scmp.eq.s32.totalorder %s21, 0
      %p209 = por %p207, %p208
      %p210 = scmp.ne.s32.totalorder %s199, %s202
      %p211 = scmp.eq.s32.totalorder %s26, 1
      %p212 = por %p210, %p211
      %p213 = scmp.ne.s32.totalorder %s202, %s203
      %p214 = scmp.eq.s32.totalorder %s26, 0
      %p215 = por %p213, %p214
      %p216 = scmp.ne.s32.totalorder %s202, %s203
      %p217 = scmp.eq.s32.totalorder %s27, 1
      %p218 = por %p216, %p217
      %p220 = scmp.ne.s32.totalorder %s203, %s219
      %p221 = scmp.eq.s32.totalorder %s27, 0
      %p222 = por %p220, %p221
      %p223 = scmp.le.s32.totalorder 1, %s21
      %p224 = scmp.lt.s32.totalorder %s21, 3
      %p225 = pnand %p223, %p224
      %p226 = pneg %p225
      // Predicated region
      $region9: #{tpu_custom_call.1} parent=5 // pred_check
        _
      $region10: #{tpu_custom_call.1} parent=5 // pred_check_branch
        %228 = sbr.rel (%p225) target = $region12
      $region11: #{tpu_custom_call.1} parent=5 // pred_region
        %s229 = ssub.s32 %s21, 1
        // Predicated region
        $region13: #{tpu_custom_call.1} parent=11 // pred_check
          %p230 = pneg %p82
        $region14: #{tpu_custom_call.1} parent=11 // pred_check_branch
          %232 = sbr.rel (%p230) target = $region16
        $region15: #{tpu_custom_call.1} parent=11 // pred_region
          %s234 = ssub.s32 3072, 3072
          %235 = vsyncadd [#allocation8], %s234
          %s236 = sshll.u32 [#allocation7], 4
          %s237 = int_to_ptr.vmem [resolvable:$true] %s236
          %242 = dma.hbm_to_vmem [thread:$0]  %s1, 3072, %s237, [#allocation8], 64, 64, 4
        $region16: #{tpu_custom_call.1} parent=11 // pred_fallthru
          _
        // Predicated region
        $region17: #{tpu_custom_call.1} parent=11 // pred_check
          %p243 = pneg %p103
        $region18: #{tpu_custom_call.1} parent=11 // pred_check_branch
          %245 = sbr.rel (%p243) target = $region20
        $region19: #{tpu_custom_call.1} parent=11 // pred_region
          _
        $region20: #{tpu_custom_call.1} parent=11 // pred_fallthru
          _
        // Predicated region
        $region21: #{tpu_custom_call.1} parent=11 // pred_check
          %p246 = pneg %p124
        $region22: #{tpu_custom_call.1} parent=11 // pred_check_branch
          %248 = sbr.rel (%p246) target = $region24
        $region23: #{tpu_custom_call.1} parent=11 // pred_region
          %s250 = ssub.s32 3072, 3072
          %251 = vsyncadd [#allocation8], %s250
          %s252 = sshll.u32 [#allocation9], 4
          %s253 = int_to_ptr.vmem [resolvable:$true] %s252
          %258 = dma.hbm_to_vmem [thread:$0]  %s3, 3072, %s253, [#allocation8], 64, 64, 4
        $region24: #{tpu_custom_call.1} parent=11 // pred_fallthru
          _
        // Predicated region
        $region25: #{tpu_custom_call.1} parent=11 // pred_check
          %p259 = pneg %p145
        $region26: #{tpu_custom_call.1} parent=11 // pred_check_branch
          %261 = sbr.rel (%p259) target = $region28
        $region27: #{tpu_custom_call.1} parent=11 // pred_region
          _
        $region28: #{tpu_custom_call.1} parent=11 // pred_fallthru
          _
        // Predicated region
        $region29: #{tpu_custom_call.1} parent=11 // pred_check
          %p262 = pneg %p166
        $region30: #{tpu_custom_call.1} parent=11 // pred_check_branch
          %264 = sbr.rel (%p262) target = $region32
        $region31: #{tpu_custom_call.1} parent=11 // pred_region
          %s266 = ssub.s32 1024, 1024
          %267 = vsyncadd [#allocation11], %s266
          %s268 = sshll.u32 [#allocation10], 4
          %s269 = int_to_ptr.vmem [resolvable:$true] %s268
          %274 = dma.hbm_to_vmem [thread:$0]  %s5, 1024, %s269, [#allocation11], 64, 64, 4
        $region32: #{tpu_custom_call.1} parent=11 // pred_fallthru
          _
        // Predicated region
        $region33: #{tpu_custom_call.1} parent=11 // pred_check
          %p275 = pneg %p187
        $region34: #{tpu_custom_call.1} parent=11 // pred_check_branch
          %277 = sbr.rel (%p275) target = $region36
        $region35: #{tpu_custom_call.1} parent=11 // pred_region
          _
        $region36: #{tpu_custom_call.1} parent=11 // pred_fallthru
          _
      $region12: #{tpu_custom_call.1} parent=5 // pred_fallthru
        _
      %p278 = scmp.lt.s32.totalorder %s21, 2
      // Predicated region
      $region37: #{tpu_custom_call.1} parent=5 // pred_check
        %p279 = pneg %p278
      $region38: #{tpu_custom_call.1} parent=5 // pred_check_branch
        %281 = sbr.rel (%p279) target = $region40
      $region39: #{tpu_custom_call.1} parent=5 // pred_region
        // Predicated region
        $region41: #{tpu_custom_call.1} parent=39 // pred_check
          %p282 = pneg %p55
        $region42: #{tpu_custom_call.1} parent=39 // pred_check_branch
          %284 = sbr.rel (%p282) target = $region44
        $region43: #{tpu_custom_call.1} parent=39 // pred_region
          %s285 = sand.u32 %s45, 1
          %s286 = scalar_lea.sflag [#allocation5], %s285
          %s287 = sand.u32 %s45, 1
          %s288 = smul.addr %s287, 8
          %s289 = scalar_lea.vmem [#allocation4], %s288
          %s290 = smul.u32 2, %s29
          %s292 = ssub.s32 128, 128
          %293 = vsyncadd %s286, %s292
          %s294 = smul.addr %s28, 2
          %s295 = sadd.s32 %s290, %s294
          %s296 = smul.addr %s295, 64
          %s297 = scalar_lea.hbm %s0, %s296
          %s298 = sshll.u32 %s289, 4
          %s299 = int_to_ptr.vmem [resolvable:$true] %s298
          %304 = dma.hbm_to_vmem [thread:$0]  %s297, 128, %s299, %s286, 64, 64, 4
        $region44: #{tpu_custom_call.1} parent=39 // pred_fallthru
          _
      $region40: #{tpu_custom_call.1} parent=5 // pred_fallthru
        _
      %p305 = scmp.le.s32.totalorder 1, %s21
      %p306 = scmp.lt.s32.totalorder %s21, 3
      %p307 = pnand %p305, %p306
      %p308 = pneg %p307
      // Predicated region
      $region45: #{tpu_custom_call.1} parent=5 // pred_check
        _
      $region46: #{tpu_custom_call.1} parent=5 // pred_check_branch
        %310 = sbr.rel (%p307) target = $region48
      $region47: #{tpu_custom_call.1} parent=5 // pred_region
        %s311 = ssub.s32 %s21, 1
        %s312 = sand.u32 %s48, 1
        %s313 = scalar_lea.sflag [#allocation5], %s312
        %s314 = sand.u32 %s48, 1
        %s315 = smul.addr %s314, 8
        %s316 = scalar_lea.vmem [#allocation4], %s315
        // Predicated region
        $region49: #{tpu_custom_call.1} parent=47 // pred_check
          %p317 = pneg %p61
        $region50: #{tpu_custom_call.1} parent=47 // pred_check_branch
          %319 = sbr.rel (%p317) target = $region52
        $region51: #{tpu_custom_call.1} parent=47 // pred_region
          %320 = dma.done %s313, 128
        $region52: #{tpu_custom_call.1} parent=47 // pred_fallthru
          _
        // Predicated region
        $region53: #{tpu_custom_call.1} parent=47 // pred_check
          %p321 = pneg %p82
        $region54: #{tpu_custom_call.1} parent=47 // pred_check_branch
          %323 = sbr.rel (%p321) target = $region56
        $region55: #{tpu_custom_call.1} parent=47 // pred_region
          %324 = dma.done [#allocation8], 3072
        $region56: #{tpu_custom_call.1} parent=47 // pred_fallthru
          _
        // Predicated region
        $region57: #{tpu_custom_call.1} parent=47 // pred_check
          %p325 = pneg %p124
        $region58: #{tpu_custom_call.1} parent=47 // pred_check_branch
          %327 = sbr.rel (%p325) target = $region60
        $region59: #{tpu_custom_call.1} parent=47 // pred_region
          %328 = dma.done [#allocation8], 3072
        $region60: #{tpu_custom_call.1} parent=47 // pred_fallthru
          _
        // Predicated region
        $region61: #{tpu_custom_call.1} parent=47 // pred_check
          %p329 = pneg %p166
        $region62: #{tpu_custom_call.1} parent=47 // pred_check_branch
          %331 = sbr.rel (%p329) target = $region64
        $region63: #{tpu_custom_call.1} parent=47 // pred_region
          %332 = dma.done [#allocation11], 1024
        $region64: #{tpu_custom_call.1} parent=47 // pred_fallthru
          _
        %s333 = sand.u32 %s48, 1
        %s334 = scalar_lea.sflag [#allocation5], %s333
        %s335 = sand.u32 %s48, 1
        %s336 = smul.addr %s335, 8
        %s337 = scalar_lea.vmem [#allocation4], %s336
        %p338 = pneg %p61
        %p339 = pneg %p58
        %p340 = pneg %p82
        %p341 = pneg %p79
        %p342 = pneg %p103
        %p343 = pneg %p100
        %p344 = pneg %p124
        %p345 = pneg %p121
        %p346 = pneg %p145
        %p347 = pneg %p142
        %p348 = pneg %p166
        %p349 = pneg %p163
        %p350 = pneg %p187
        %p351 = pneg %p184
        %p352 = pneg %p215
        %p353 = pneg %p212
        %s354 = sand.u32 %s202, 1
        %s355 = scalar_lea.sflag [#allocation6], %s354
        %s356 = sand.u32 %s202, 1
        %s357 = smul.addr %s356, 16
        %s358 = scalar_lea.vmem [#allocation12], %s357
        %s359 = smul.u32 2, %s31
        %s360 = smul.u32 2, %s31
        %p362 = scmp.eq.s32.totalorder %s31, 0
        // Predicated region
        $region65: #{tpu_custom_call.1} parent=47 // pred_check
          %p363 = pneg %p362
        $region66: #{tpu_custom_call.1} parent=47 // pred_check_branch
          %365 = sbr.rel (%p363) target = $region68
        $region67: #{tpu_custom_call.1} parent=47 // pred_region
          %366 = vst [vmem:[#allocation2] sm:$0x3] 0
          %367 = vst [vmem:[#allocation3] sm:$0x3] 0
        $region68: #{tpu_custom_call.1} parent=47 // pred_fallthru
          _
        %v368 = vld [vmem:[%s316] sm:$0xf]
        %v369 = vld [vmem:[%s316 + $0x4] sm:$0xf]
        %v370 = vld [vmem:[#allocation2] sm:$0x3]
        %v373 = vunpack.c.l.b16 %v368
        %v374 = vunpack.c.l.b16 %v369
        %v375 = vpack.c.b16 %v374, %v373
        %v376 = vrot.slane %v375, 6
        %vm377 = vcmask 1041408
        %v380 = vsel %vm377, %v370, %v376
        %vm383 = vcmask 1046528
        %v384 = vrot.slane %v380, 1
        %v385 = vrot.slane %v376, 1
        %v386 = vsel %vm383, %v384, %v385
        %vm388 = vcmask 1045504
        %v389 = vrot.slane %v380, 2
        %v390 = vrot.slane %v376, 2
        %v391 = vsel %vm388, %v389, %v390
        %v393 = vld [vmem:[#allocation7] sm:$0xf]
        %v394 = vld [vmem:[#allocation7 + $0x4] sm:$0xf]
        %v395 = vld [vmem:[#allocation7 + $0x8] sm:$0xf]
        %v396 = vld [vmem:[#allocation7 + $0xc] sm:$0xf]
        %v397 = vld [vmem:[#allocation7 + $0x10] sm:$0xf]
        %v398 = vld [vmem:[#allocation7 + $0x14] sm:$0xf]
        %v399 = vld [vmem:[#allocation7 + $0x18] sm:$0xf]
        %v400 = vld [vmem:[#allocation7 + $0x1c] sm:$0xf]
        %v401 = vld [vmem:[#allocation7 + $0x20] sm:$0xf]
        %v402 = vld [vmem:[#allocation7 + $0x24] sm:$0xf]
        %v403 = vld [vmem:[#allocation7 + $0x28] sm:$0xf]
        %v404 = vld [vmem:[#allocation7 + $0x2c] sm:$0xf]
        %v405 = vld [vmem:[#allocation7 + $0x30] sm:$0xf]
        %v406 = vld [vmem:[#allocation7 + $0x34] sm:$0xf]
        %v407 = vld [vmem:[#allocation7 + $0x38] sm:$0xf]
        %v408 = vld [vmem:[#allocation7 + $0x3c] sm:$0xf]
        %v409 = vld [vmem:[#allocation7 + $0x40] sm:$0xf]
        %v410 = vld [vmem:[#allocation7 + $0x44] sm:$0xf]
        %v411 = vld [vmem:[#allocation7 + $0x48] sm:$0xf]
        %v412 = vld [vmem:[#allocation7 + $0x4c] sm:$0xf]
        %v413 = vld [vmem:[#allocation7 + $0x50] sm:$0xf]
        %v414 = vld [vmem:[#allocation7 + $0x54] sm:$0xf]
        %v415 = vld [vmem:[#allocation7 + $0x58] sm:$0xf]
        %v416 = vld [vmem:[#allocation7 + $0x5c] sm:$0xf]
        %v417 = vld [vmem:[#allocation7 + $0x60] sm:$0xf]
        %v418 = vld [vmem:[#allocation7 + $0x64] sm:$0xf]
        %v419 = vld [vmem:[#allocation7 + $0x68] sm:$0xf]
        %v420 = vld [vmem:[#allocation7 + $0x6c] sm:$0xf]
        %v421 = vld [vmem:[#allocation7 + $0x70] sm:$0xf]
        %v422 = vld [vmem:[#allocation7 + $0x74] sm:$0xf]
        %v423 = vld [vmem:[#allocation7 + $0x78] sm:$0xf]
        %v424 = vld [vmem:[#allocation7 + $0x7c] sm:$0xf]
        %v425 = vld [vmem:[#allocation7 + $0x80] sm:$0xf]
        %v426 = vld [vmem:[#allocation7 + $0x84] sm:$0xf]
        %v427 = vld [vmem:[#allocation7 + $0x88] sm:$0xf]
        %v428 = vld [vmem:[#allocation7 + $0x8c] sm:$0xf]
        %v429 = vld [vmem:[#allocation7 + $0x90] sm:$0xf]
        %v430 = vld [vmem:[#allocation7 + $0x94] sm:$0xf]
        %v431 = vld [vmem:[#allocation7 + $0x98] sm:$0xf]
        %v432 = vld [vmem:[#allocation7 + $0x9c] sm:$0xf]
        %v433 = vld [vmem:[#allocation7 + $0xa0] sm:$0xf]
        %v434 = vld [vmem:[#allocation7 + $0xa4] sm:$0xf]
        %v435 = vld [vmem:[#allocation7 + $0xa8] sm:$0xf]
        %v436 = vld [vmem:[#allocation7 + $0xac] sm:$0xf]
        %v437 = vld [vmem:[#allocation7 + $0xb0] sm:$0xf]
        %v438 = vld [vmem:[#allocation7 + $0xb4] sm:$0xf]
        %v439 = vld [vmem:[#allocation7 + $0xb8] sm:$0xf]
        %v440 = vld [vmem:[#allocation7 + $0xbc] sm:$0xf]
        %v489 = vunpack.c.l.b16 %v393
        %v490 = vunpack.c.l.b16 %v394
        %v491 = vunpack.c.l.b16 %v395
        %v492 = vunpack.c.l.b16 %v396
        %v493 = vunpack.c.l.b16 %v397
        %v494 = vunpack.c.l.b16 %v398
        %v495 = vunpack.c.l.b16 %v399
        %v496 = vunpack.c.l.b16 %v400
        %v497 = vunpack.c.l.b16 %v401
        %v498 = vunpack.c.l.b16 %v402
        %v499 = vunpack.c.l.b16 %v403
        %v500 = vunpack.c.l.b16 %v404
        %v501 = vunpack.c.l.b16 %v405
        %v502 = vunpack.c.l.b16 %v406
        %v503 = vunpack.c.l.b16 %v407
        %v504 = vunpack.c.l.b16 %v408
        %v505 = vunpack.c.l.b16 %v409
        %v506 = vunpack.c.l.b16 %v410
        %v507 = vunpack.c.l.b16 %v411
        %v508 = vunpack.c.l.b16 %v412
        %v509 = vunpack.c.l.b16 %v413
        %v510 = vunpack.c.l.b16 %v414
        %v511 = vunpack.c.l.b16 %v415
        %v512 = vunpack.c.l.b16 %v416
        %v513 = vunpack.c.l.b16 %v417
        %v514 = vunpack.c.l.b16 %v418
        %v515 = vunpack.c.l.b16 %v419
        %v516 = vunpack.c.l.b16 %v420
        %v517 = vunpack.c.l.b16 %v421
        %v518 = vunpack.c.l.b16 %v422
        %v519 = vunpack.c.l.b16 %v423
        %v520 = vunpack.c.l.b16 %v424
        %v521 = vunpack.c.l.b16 %v425
        %v522 = vunpack.c.l.b16 %v426
        %v523 = vunpack.c.l.b16 %v427
        %v524 = vunpack.c.l.b16 %v428
        %v525 = vunpack.c.l.b16 %v429
        %v526 = vunpack.c.l.b16 %v430
        %v527 = vunpack.c.l.b16 %v431
        %v528 = vunpack.c.l.b16 %v432
        %v529 = vunpack.c.l.b16 %v433
        %v530 = vunpack.c.l.b16 %v434
        %v531 = vunpack.c.l.b16 %v435
        %v532 = vunpack.c.l.b16 %v436
        %v533 = vunpack.c.l.b16 %v437
        %v534 = vunpack.c.l.b16 %v438
        %v535 = vunpack.c.l.b16 %v439
        %v536 = vunpack.c.l.b16 %v440
        %v537 = vpack.c.b16 %v490, %v489
        %v538 = vpack.c.b16 %v492, %v491
        %v539 = vpack.c.b16 %v494, %v493
        %v540 = vpack.c.b16 %v496, %v495
        %v541 = vpack.c.b16 %v498, %v497
        %v542 = vpack.c.b16 %v500, %v499
        %v543 = vpack.c.b16 %v502, %v501
        %v544 = vpack.c.b16 %v504, %v503
        %v545 = vpack.c.b16 %v506, %v505
        %v546 = vpack.c.b16 %v508, %v507
        %v547 = vpack.c.b16 %v510, %v509
        %v548 = vpack.c.b16 %v512, %v511
        %v549 = vpack.c.b16 %v514, %v513
        %v550 = vpack.c.b16 %v516, %v515
        %v551 = vpack.c.b16 %v518, %v517
        %v552 = vpack.c.b16 %v520, %v519
        %v553 = vpack.c.b16 %v522, %v521
        %v554 = vpack.c.b16 %v524, %v523
        %v555 = vpack.c.b16 %v526, %v525
        %v556 = vpack.c.b16 %v528, %v527
        %v557 = vpack.c.b16 %v530, %v529
        %v558 = vpack.c.b16 %v532, %v531
        %v559 = vpack.c.b16 %v534, %v533
        %v560 = vpack.c.b16 %v536, %v535
        %585 = vmatprep.subr.bf16.mxu0 0
        %586 = vmatpush1.bf16.msra.mxu0 %v544
        %587 = vmatprep.subr.bf16.mxu0 0
        %588 = vmatpush1.bf16.msra.mxu0 %v543
        %589 = vmatprep.subr.bf16.mxu0 0
        %590 = vmatpush1.bf16.msra.mxu0 %v542
        %591 = vmatprep.subr.bf16.mxu0 0
        %592 = vmatpush1.bf16.msra.mxu0 %v541
        %593 = vmatprep.subr.bf16.mxu0 0
        %594 = vmatpush1.bf16.msra.mxu0 %v540
        %595 = vmatprep.subr.bf16.mxu0 0
        %596 = vmatpush1.bf16.msra.mxu0 %v539
        %597 = vmatprep.subr.bf16.mxu0 0
        %598 = vmatpush1.bf16.msra.mxu0 %v538
        %599 = vmatprep.subr.bf16.mxu0 0
        %600 = vmatpush1.bf16.msra.mxu0 %v537
        %601 = vmatprep.subr.bf16.mxu0 0
        %602 = vmatpush2.bf16.msra.mxu0 %v552
        %603 = vmatprep.subr.bf16.mxu0 0
        %604 = vmatpush2.bf16.msra.mxu0 %v551
        %605 = vmatprep.subr.bf16.mxu0 0
        %606 = vmatpush2.bf16.msra.mxu0 %v550
        %607 = vmatprep.subr.bf16.mxu0 0
        %608 = vmatpush2.bf16.msra.mxu0 %v549
        %609 = vmatprep.subr.bf16.mxu0 0
        %610 = vmatpush2.bf16.msra.mxu0 %v548
        %611 = vmatprep.subr.bf16.mxu0 0
        %612 = vmatpush2.bf16.msra.mxu0 %v547
        %613 = vmatprep.subr.bf16.mxu0 0
        %614 = vmatpush2.bf16.msra.mxu0 %v546
        %615 = vmatprep.subr.bf16.mxu0 0
        %616 = vmatpush2.bf16.msra.mxu0 %v545
        %617 = vmatprep.mubr.bf16.mxu0 %v386
        %618 = vmatmul.mubr.bf16.gmra.mxu0 %v380
        %v619 = vpop.f32.mrf.mxu0
        %v620 = vadd.f32 0.0, %v619
        %v621 = vpop.f32.mrf.mxu0
        %v622 = vpop.f32.mrf.mxu0
        %v623 = vadd.f32 0.0, %v622
        %v624 = vpop.f32.mrf.mxu0
        %625 = vdwg.mxu0
        %626 = vmatprep.subr.bf16.mxu0 0
        %627 = vmatpush1.bf16.msra.mxu0 %v560
        %628 = vmatprep.subr.bf16.mxu0 0
        %629 = vmatpush1.bf16.msra.mxu0 %v559
        %630 = vmatprep.subr.bf16.mxu0 0
        %631 = vmatpush1.bf16.msra.mxu0 %v558
        %632 = vmatprep.subr.bf16.mxu0 0
        %633 = vmatpush1.bf16.msra.mxu0 %v557
        %634 = vmatprep.subr.bf16.mxu0 0
        %635 = vmatpush1.bf16.msra.mxu0 %v556
        %636 = vmatprep.subr.bf16.mxu0 0
        %637 = vmatpush1.bf16.msra.mxu0 %v555
        %638 = vmatprep.subr.bf16.mxu0 0
        %639 = vmatpush1.bf16.msra.mxu0 %v554
        %640 = vmatprep.subr.bf16.mxu0 0
        %641 = vmatpush1.bf16.msra.mxu0 %v553
        %642 = vmatprep.subr.bf16.mxu0 0
        %643 = vmatpush2.bf16.msra.mxu0 0
        %644 = vmatprep.subr.bf16.mxu0 0
        %645 = vmatpush2.bf16.msra.mxu0 0
        %646 = vmatprep.subr.bf16.mxu0 0
        %647 = vmatpush2.bf16.msra.mxu0 0
        %648 = vmatprep.subr.bf16.mxu0 0
        %649 = vmatpush2.bf16.msra.mxu0 0
        %650 = vmatprep.subr.bf16.mxu0 0
        %651 = vmatpush2.bf16.msra.mxu0 0
        %652 = vmatprep.subr.bf16.mxu0 0
        %653 = vmatpush2.bf16.msra.mxu0 0
        %654 = vmatprep.subr.bf16.mxu0 0
        %655 = vmatpush2.bf16.msra.mxu0 0
        %656 = vmatprep.subr.bf16.mxu0 0
        %657 = vmatpush2.bf16.msra.mxu0 0
        %658 = vmatprep.mubr.bf16.mxu0 0
        %659 = vmatmul.mubr.bf16.gmra.mxu0 %v391
        %v660 = vpop.f32.mrf.mxu0
        %v661 = vadd.f32 %v620, %v660
        %v662 = vpop.f32.mrf.mxu0
        %v663 = vpop.f32.mrf.mxu0
        %v664 = vadd.f32 %v623, %v663
        %v665 = vpop.f32.mrf.mxu0
        %666 = vdwg.mxu0
        %v667 = vld [vmem:[%s2] sm:$0x1]
        %v669 = vlaneseq
        %v670 = vshrl.u32 %v669, 7
        %v671 = vsub.s32 0, %v670
        %v672 = vrot.slane %v667, %v671
        %v674 = vadd.f32 %v661, %v672
        %v675 = vadd.f32 %v664, %v672
        %v676 = vmax.f32 %v674, 0.0
        %v677 = vmax.f32 %v675, 0.0
        %v678 = vpack.c.bf16 %v677, %v676
        %v679 = vld [vmem:[#allocation3] sm:$0x3]
        %v681 = vrot.slane %v678, 6
        %v684 = vsel %vm377, %v679, %v681
        %v687 = vrot.slane %v684, 1
        %v688 = vrot.slane %v681, 1
        %v689 = vsel %vm383, %v687, %v688
        %v691 = vrot.slane %v684, 2
        %v692 = vrot.slane %v681, 2
        %v693 = vsel %vm388, %v691, %v692
        %v695 = vld [vmem:[#allocation9] sm:$0xf]
        %v696 = vld [vmem:[#allocation9 + $0x4] sm:$0xf]
        %v697 = vld [vmem:[#allocation9 + $0x8] sm:$0xf]
        %v698 = vld [vmem:[#allocation9 + $0xc] sm:$0xf]
        %v699 = vld [vmem:[#allocation9 + $0x10] sm:$0xf]
        %v700 = vld [vmem:[#allocation9 + $0x14] sm:$0xf]
        %v701 = vld [vmem:[#allocation9 + $0x18] sm:$0xf]
        %v702 = vld [vmem:[#allocation9 + $0x1c] sm:$0xf]
        %v703 = vld [vmem:[#allocation9 + $0x20] sm:$0xf]
        %v704 = vld [vmem:[#allocation9 + $0x24] sm:$0xf]
        %v705 = vld [vmem:[#allocation9 + $0x28] sm:$0xf]
        %v706 = vld [vmem:[#allocation9 + $0x2c] sm:$0xf]
        %v707 = vld [vmem:[#allocation9 + $0x30] sm:$0xf]
        %v708 = vld [vmem:[#allocation9 + $0x34] sm:$0xf]
        %v709 = vld [vmem:[#allocation9 + $0x38] sm:$0xf]
        %v710 = vld [vmem:[#allocation9 + $0x3c] sm:$0xf]
        %v711 = vld [vmem:[#allocation9 + $0x40] sm:$0xf]
        %v712 = vld [vmem:[#allocation9 + $0x44] sm:$0xf]
        %v713 = vld [vmem:[#allocation9 + $0x48] sm:$0xf]
        %v714 = vld [vmem:[#allocation9 + $0x4c] sm:$0xf]
        %v715 = vld [vmem:[#allocation9 + $0x50] sm:$0xf]
        %v716 = vld [vmem:[#allocation9 + $0x54] sm:$0xf]
        %v717 = vld [vmem:[#allocation9 + $0x58] sm:$0xf]
        %v718 = vld [vmem:[#allocation9 + $0x5c] sm:$0xf]
        %v719 = vld [vmem:[#allocation9 + $0x60] sm:$0xf]
        %v720 = vld [vmem:[#allocation9 + $0x64] sm:$0xf]
        %v721 = vld [vmem:[#allocation9 + $0x68] sm:$0xf]
        %v722 = vld [vmem:[#allocation9 + $0x6c] sm:$0xf]
        %v723 = vld [vmem:[#allocation9 + $0x70] sm:$0xf]
        %v724 = vld [vmem:[#allocation9 + $0x74] sm:$0xf]
        %v725 = vld [vmem:[#allocation9 + $0x78] sm:$0xf]
        %v726 = vld [vmem:[#allocation9 + $0x7c] sm:$0xf]
        %v727 = vld [vmem:[#allocation9 + $0x80] sm:$0xf]
        %v728 = vld [vmem:[#allocation9 + $0x84] sm:$0xf]
        %v729 = vld [vmem:[#allocation9 + $0x88] sm:$0xf]
        %v730 = vld [vmem:[#allocation9 + $0x8c] sm:$0xf]
        %v731 = vld [vmem:[#allocation9 + $0x90] sm:$0xf]
        %v732 = vld [vmem:[#allocation9 + $0x94] sm:$0xf]
        %v733 = vld [vmem:[#allocation9 + $0x98] sm:$0xf]
        %v734 = vld [vmem:[#allocation9 + $0x9c] sm:$0xf]
        %v735 = vld [vmem:[#allocation9 + $0xa0] sm:$0xf]
        %v736 = vld [vmem:[#allocation9 + $0xa4] sm:$0xf]
        %v737 = vld [vmem:[#allocation9 + $0xa8] sm:$0xf]
        %v738 = vld [vmem:[#allocation9 + $0xac] sm:$0xf]
        %v739 = vld [vmem:[#allocation9 + $0xb0] sm:$0xf]
        %v740 = vld [vmem:[#allocation9 + $0xb4] sm:$0xf]
        %v741 = vld [vmem:[#allocation9 + $0xb8] sm:$0xf]
        %v742 = vld [vmem:[#allocation9 + $0xbc] sm:$0xf]
        %v791 = vunpack.c.l.b16 %v695
        %v792 = vunpack.c.l.b16 %v696
        %v793 = vunpack.c.l.b16 %v697
        %v794 = vunpack.c.l.b16 %v698
        %v795 = vunpack.c.l.b16 %v699
        %v796 = vunpack.c.l.b16 %v700
        %v797 = vunpack.c.l.b16 %v701
        %v798 = vunpack.c.l.b16 %v702
        %v799 = vunpack.c.l.b16 %v703
        %v800 = vunpack.c.l.b16 %v704
        %v801 = vunpack.c.l.b16 %v705
        %v802 = vunpack.c.l.b16 %v706
        %v803 = vunpack.c.l.b16 %v707
        %v804 = vunpack.c.l.b16 %v708
        %v805 = vunpack.c.l.b16 %v709
        %v806 = vunpack.c.l.b16 %v710
        %v807 = vunpack.c.l.b16 %v711
        %v808 = vunpack.c.l.b16 %v712
        %v809 = vunpack.c.l.b16 %v713
        %v810 = vunpack.c.l.b16 %v714
        %v811 = vunpack.c.l.b16 %v715
        %v812 = vunpack.c.l.b16 %v716
        %v813 = vunpack.c.l.b16 %v717
        %v814 = vunpack.c.l.b16 %v718
        %v815 = vunpack.c.l.b16 %v719
        %v816 = vunpack.c.l.b16 %v720
        %v817 = vunpack.c.l.b16 %v721
        %v818 = vunpack.c.l.b16 %v722
        %v819 = vunpack.c.l.b16 %v723
        %v820 = vunpack.c.l.b16 %v724
        %v821 = vunpack.c.l.b16 %v725
        %v822 = vunpack.c.l.b16 %v726
        %v823 = vunpack.c.l.b16 %v727
        %v824 = vunpack.c.l.b16 %v728
        %v825 = vunpack.c.l.b16 %v729
        %v826 = vunpack.c.l.b16 %v730
        %v827 = vunpack.c.l.b16 %v731
        %v828 = vunpack.c.l.b16 %v732
        %v829 = vunpack.c.l.b16 %v733
        %v830 = vunpack.c.l.b16 %v734
        %v831 = vunpack.c.l.b16 %v735
        %v832 = vunpack.c.l.b16 %v736
        %v833 = vunpack.c.l.b16 %v737
        %v834 = vunpack.c.l.b16 %v738
        %v835 = vunpack.c.l.b16 %v739
        %v836 = vunpack.c.l.b16 %v740
        %v837 = vunpack.c.l.b16 %v741
        %v838 = vunpack.c.l.b16 %v742
        %v839 = vpack.c.b16 %v792, %v791
        %v840 = vpack.c.b16 %v794, %v793
        %v841 = vpack.c.b16 %v796, %v795
        %v842 = vpack.c.b16 %v798, %v797
        %v843 = vpack.c.b16 %v800, %v799
        %v844 = vpack.c.b16 %v802, %v801
        %v845 = vpack.c.b16 %v804, %v803
        %v846 = vpack.c.b16 %v806, %v805
        %v847 = vpack.c.b16 %v808, %v807
        %v848 = vpack.c.b16 %v810, %v809
        %v849 = vpack.c.b16 %v812, %v811
        %v850 = vpack.c.b16 %v814, %v813
        %v851 = vpack.c.b16 %v816, %v815
        %v852 = vpack.c.b16 %v818, %v817
        %v853 = vpack.c.b16 %v820, %v819
        %v854 = vpack.c.b16 %v822, %v821
        %v855 = vpack.c.b16 %v824, %v823
        %v856 = vpack.c.b16 %v826, %v825
        %v857 = vpack.c.b16 %v828, %v827
        %v858 = vpack.c.b16 %v830, %v829
        %v859 = vpack.c.b16 %v832, %v831
        %v860 = vpack.c.b16 %v834, %v833
        %v861 = vpack.c.b16 %v836, %v835
        %v862 = vpack.c.b16 %v838, %v837
        %887 = vmatprep.subr.bf16.mxu0 0
        %888 = vmatpush1.bf16.msra.mxu0 %v846
        %889 = vmatprep.subr.bf16.mxu0 0
        %890 = vmatpush1.bf16.msra.mxu0 %v845
        %891 = vmatprep.subr.bf16.mxu0 0
        %892 = vmatpush1.bf16.msra.mxu0 %v844
        %893 = vmatprep.subr.bf16.mxu0 0
        %894 = vmatpush1.bf16.msra.mxu0 %v843
        %895 = vmatprep.subr.bf16.mxu0 0
        %896 = vmatpush1.bf16.msra.mxu0 %v842
        %897 = vmatprep.subr.bf16.mxu0 0
        %898 = vmatpush1.bf16.msra.mxu0 %v841
        %899 = vmatprep.subr.bf16.mxu0 0
        %900 = vmatpush1.bf16.msra.mxu0 %v840
        %901 = vmatprep.subr.bf16.mxu0 0
        %902 = vmatpush1.bf16.msra.mxu0 %v839
        %903 = vmatprep.subr.bf16.mxu0 0
        %904 = vmatpush2.bf16.msra.mxu0 %v854
        %905 = vmatprep.subr.bf16.mxu0 0
        %906 = vmatpush2.bf16.msra.mxu0 %v853
        %907 = vmatprep.subr.bf16.mxu0 0
        %908 = vmatpush2.bf16.msra.mxu0 %v852
        %909 = vmatprep.subr.bf16.mxu0 0
        %910 = vmatpush2.bf16.msra.mxu0 %v851
        %911 = vmatprep.subr.bf16.mxu0 0
        %912 = vmatpush2.bf16.msra.mxu0 %v850
        %913 = vmatprep.subr.bf16.mxu0 0
        %914 = vmatpush2.bf16.msra.mxu0 %v849
        %915 = vmatprep.subr.bf16.mxu0 0
        %916 = vmatpush2.bf16.msra.mxu0 %v848
        %917 = vmatprep.subr.bf16.mxu0 0
        %918 = vmatpush2.bf16.msra.mxu0 %v847
        %919 = vmatprep.mubr.bf16.mxu0 %v689
        %920 = vmatmul.mubr.bf16.gmra.mxu0 %v684
        %v921 = vpop.f32.mrf.mxu0
        %v922 = vadd.f32 0.0, %v921
        %v923 = vpop.f32.mrf.mxu0
        %v924 = vpop.f32.mrf.mxu0
        %v925 = vadd.f32 0.0, %v924
        %v926 = vpop.f32.mrf.mxu0
        %927 = vdwg.mxu0
        %928 = vmatprep.subr.bf16.mxu0 0
        %929 = vmatpush1.bf16.msra.mxu0 %v862
        %930 = vmatprep.subr.bf16.mxu0 0
        %931 = vmatpush1.bf16.msra.mxu0 %v861
        %932 = vmatprep.subr.bf16.mxu0 0
        %933 = vmatpush1.bf16.msra.mxu0 %v860
        %934 = vmatprep.subr.bf16.mxu0 0
        %935 = vmatpush1.bf16.msra.mxu0 %v859
        %936 = vmatprep.subr.bf16.mxu0 0
        %937 = vmatpush1.bf16.msra.mxu0 %v858
        %938 = vmatprep.subr.bf16.mxu0 0
        %939 = vmatpush1.bf16.msra.mxu0 %v857
        %940 = vmatprep.subr.bf16.mxu0 0
        %941 = vmatpush1.bf16.msra.mxu0 %v856
        %942 = vmatprep.subr.bf16.mxu0 0
        %943 = vmatpush1.bf16.msra.mxu0 %v855
        %944 = vmatprep.subr.bf16.mxu0 0
        %945 = vmatpush2.bf16.msra.mxu0 0
        %946 = vmatprep.subr.bf16.mxu0 0
        %947 = vmatpush2.bf16.msra.mxu0 0
        %948 = vmatprep.subr.bf16.mxu0 0
        %949 = vmatpush2.bf16.msra.mxu0 0
        %950 = vmatprep.subr.bf16.mxu0 0
        %951 = vmatpush2.bf16.msra.mxu0 0
        %952 = vmatprep.subr.bf16.mxu0 0
        %953 = vmatpush2.bf16.msra.mxu0 0
        %954 = vmatprep.subr.bf16.mxu0 0
        %955 = vmatpush2.bf16.msra.mxu0 0
        %956 = vmatprep.subr.bf16.mxu0 0
        %957 = vmatpush2.bf16.msra.mxu0 0
        %958 = vmatprep.subr.bf16.mxu0 0
        %959 = vmatpush2.bf16.msra.mxu0 0
        %960 = vmatprep.mubr.bf16.mxu0 0
        %961 = vmatmul.mubr.bf16.gmra.mxu0 %v693
        %v962 = vpop.f32.mrf.mxu0
        %v963 = vadd.f32 %v922, %v962
        %v964 = vpop.f32.mrf.mxu0
        %v965 = vpop.f32.mrf.mxu0
        %v966 = vadd.f32 %v925, %v965
        %v967 = vpop.f32.mrf.mxu0
        %968 = vdwg.mxu0
        %v969 = vld [vmem:[%s4] sm:$0x1]
        %v971 = vlaneseq
        %v972 = vshrl.u32 %v971, 7
        %v973 = vsub.s32 0, %v972
        %v974 = vrot.slane %v969, %v973
        %v976 = vadd.f32 %v963, %v974
        %v977 = vadd.f32 %v966, %v974
        %v978 = vmax.f32 %v976, 0.0
        %v979 = vmax.f32 %v977, 0.0
        %v980 = vld [vmem:[#allocation10] sm:$0xf]
        %v981 = vld [vmem:[#allocation10 + $0x4] sm:$0xf]
        %v982 = vld [vmem:[#allocation10 + $0x8] sm:$0xf]
        %v983 = vld [vmem:[#allocation10 + $0xc] sm:$0xf]
        %v984 = vld [vmem:[#allocation10 + $0x10] sm:$0xf]
        %v985 = vld [vmem:[#allocation10 + $0x14] sm:$0xf]
        %v986 = vld [vmem:[#allocation10 + $0x18] sm:$0xf]
        %v987 = vld [vmem:[#allocation10 + $0x1c] sm:$0xf]
        %v988 = vld [vmem:[#allocation10 + $0x20] sm:$0xf]
        %v989 = vld [vmem:[#allocation10 + $0x24] sm:$0xf]
        %v990 = vld [vmem:[#allocation10 + $0x28] sm:$0xf]
        %v991 = vld [vmem:[#allocation10 + $0x2c] sm:$0xf]
        %v992 = vld [vmem:[#allocation10 + $0x30] sm:$0xf]
        %v993 = vld [vmem:[#allocation10 + $0x34] sm:$0xf]
        %v994 = vld [vmem:[#allocation10 + $0x38] sm:$0xf]
        %v995 = vld [vmem:[#allocation10 + $0x3c] sm:$0xf]
        %v1013 = vunpack.c.l.b16 %v980
        %v1014 = vunpack.c.l.b16 %v981
        %v1015 = vunpack.c.l.b16 %v982
        %v1016 = vunpack.c.l.b16 %v983
        %v1017 = vunpack.c.l.b16 %v984
        %v1018 = vunpack.c.l.b16 %v985
        %v1019 = vunpack.c.l.b16 %v986
        %v1020 = vunpack.c.l.b16 %v987
        %v1021 = vunpack.c.l.b16 %v988
        %v1022 = vunpack.c.l.b16 %v989
        %v1023 = vunpack.c.l.b16 %v990
        %v1024 = vunpack.c.l.b16 %v991
        %v1025 = vunpack.c.l.b16 %v992
        %v1026 = vunpack.c.l.b16 %v993
        %v1027 = vunpack.c.l.b16 %v994
        %v1028 = vunpack.c.l.b16 %v995
        %v1029 = vpack.c.b16 %v1014, %v1013
        %v1030 = vpack.c.b16 %v1016, %v1015
        %v1031 = vpack.c.b16 %v1018, %v1017
        %v1032 = vpack.c.b16 %v1020, %v1019
        %v1033 = vpack.c.b16 %v1022, %v1021
        %v1034 = vpack.c.b16 %v1024, %v1023
        %v1035 = vpack.c.b16 %v1026, %v1025
        %v1036 = vpack.c.b16 %v1028, %v1027
        %1045 = vmatprep.subr.bf16.mxu0 0
        %1046 = vmatpush1.bf16.msra.mxu0 %v1036
        %1047 = vmatprep.subr.bf16.mxu0 0
        %1048 = vmatpush1.bf16.msra.mxu0 %v1035
        %1049 = vmatprep.subr.bf16.mxu0 0
        %1050 = vmatpush1.bf16.msra.mxu0 %v1034
        %1051 = vmatprep.subr.bf16.mxu0 0
        %1052 = vmatpush1.bf16.msra.mxu0 %v1033
        %1053 = vmatprep.subr.bf16.mxu0 0
        %1054 = vmatpush1.bf16.msra.mxu0 %v1032
        %1055 = vmatprep.subr.bf16.mxu0 0
        %1056 = vmatpush1.bf16.msra.mxu0 %v1031
        %1057 = vmatprep.subr.bf16.mxu0 0
        %1058 = vmatpush1.bf16.msra.mxu0 %v1030
        %1059 = vmatprep.subr.bf16.mxu0 0
        %1060 = vmatpush1.bf16.msra.mxu0 %v1029
        %1061 = vmatprep.subr.bf16.mxu0 0
        %1062 = vmatpush2.bf16.msra.mxu0 0
        %1063 = vmatprep.subr.bf16.mxu0 0
        %1064 = vmatpush2.bf16.msra.mxu0 0
        %1065 = vmatprep.subr.bf16.mxu0 0
        %1066 = vmatpush2.bf16.msra.mxu0 0
        %1067 = vmatprep.subr.bf16.mxu0 0
        %1068 = vmatpush2.bf16.msra.mxu0 0
        %1069 = vmatprep.subr.bf16.mxu0 0
        %1070 = vmatpush2.bf16.msra.mxu0 0
        %1071 = vmatprep.subr.bf16.mxu0 0
        %1072 = vmatpush2.bf16.msra.mxu0 0
        %1073 = vmatprep.subr.bf16.mxu0 0
        %1074 = vmatpush2.bf16.msra.mxu0 0
        %1075 = vmatprep.subr.bf16.mxu0 0
        %1076 = vmatpush2.bf16.msra.mxu0 0
        %1077 = vmatprep.mubr.bf16.mxu0 0
        %1078 = vmatmul.mubr.bf16.gmra.mxu0 %v375
        %v1079 = vpop.f32.mrf.mxu0
        %v1080 = vadd.f32 0.0, %v1079
        %v1081 = vpop.f32.mrf.mxu0
        %v1082 = vpop.f32.mrf.mxu0
        %v1083 = vadd.f32 0.0, %v1082
        %v1084 = vpop.f32.mrf.mxu0
        %1085 = vdwg.mxu0
        %v1086 = vld [vmem:[%s6] sm:$0x1]
        %v1088 = vlaneseq
        %v1089 = vshrl.u32 %v1088, 7
        %v1090 = vsub.s32 0, %v1089
        %v1091 = vrot.slane %v1086, %v1090
        %v1093 = vadd.f32 %v1080, %v1091
        %v1094 = vadd.f32 %v1083, %v1091
        %v1095 = vadd.f32 %v978, %v1093
        %v1096 = vadd.f32 %v979, %v1094
        %v1097 = vmax.f32 %v1095, 0.0
        %v1098 = vmax.f32 %v1096, 0.0
        %1099 = vst [vmem:[%s358] sm:$0xff] %v1097
        %1100 = vst [vmem:[%s358 + $0x8] sm:$0xff] %v1098
        %s1101 = sand.u32 %s202, 1
        %s1102 = scalar_lea.sflag [#allocation6], %s1101
        %s1103 = sand.u32 %s202, 1
        %s1104 = smul.addr %s1103, 16
        %s1105 = scalar_lea.vmem [#allocation12], %s1104
        // Predicated region
        $region69: #{tpu_custom_call.1} parent=47 // pred_check
          %p1106 = pneg %p212
        $region70: #{tpu_custom_call.1} parent=47 // pred_check_branch
          %1108 = sbr.rel (%p1106) target = $region72
        $region71: #{tpu_custom_call.1} parent=47 // pred_region
          %s1109 = smul.u32 2, %s31
          %s1111 = ssub.s32 256, 256
          %1112 = vsyncadd %s1102, %s1111
          %s1113 = smul.addr %s30, 2
          %s1114 = sadd.s32 %s1109, %s1113
          %s1115 = smul.addr %s1114, 128
          %s1116 = scalar_lea.hbm %s7, %s1115
          %s1117 = sshll.u32 %s1105, 4
          %s1118 = int_to_ptr.vmem [resolvable:$true] %s1117
          %1123 = dma.vmem_to_hbm [thread:$0]  %s1118, 256, %s1116, %s1102, 128, 128, 8
        $region72: #{tpu_custom_call.1} parent=47 // pred_fallthru
          _
      $region48: #{tpu_custom_call.1} parent=5 // pred_fallthru
        _
      %p1124 = scmp.le.s32.totalorder 2, %s21
      // Predicated region
      $region73: #{tpu_custom_call.1} parent=5 // pred_check
        %p1125 = pneg %p1124
      $region74: #{tpu_custom_call.1} parent=5 // pred_check_branch
        %1127 = sbr.rel (%p1125) target = $region76
      $region75: #{tpu_custom_call.1} parent=5 // pred_region
        %s1128 = ssub.s32 %s21, 2
        // Predicated region
        $region77: #{tpu_custom_call.1} parent=75 // pred_check
          %p1129 = pneg %p218
        $region78: #{tpu_custom_call.1} parent=75 // pred_check_branch
          %1131 = sbr.rel (%p1129) target = $region80
        $region79: #{tpu_custom_call.1} parent=75 // pred_region
          %s1132 = sand.u32 %s203, 1
          %s1133 = scalar_lea.sflag [#allocation6], %s1132
          %s1134 = sand.u32 %s203, 1
          %s1135 = smul.addr %s1134, 16
          %s1136 = scalar_lea.vmem [#allocation12], %s1135
          %1137 = dma.done %s1133, 256
        $region80: #{tpu_custom_call.1} parent=75 // pred_fallthru
          _
      $region76: #{tpu_custom_call.1} parent=5 // pred_fallthru
        _
    $region6: #{tpu_custom_call.1} parent=1 // loop_footer
      %s25 = sadd.s32 1, %s21
    $region7: #{tpu_custom_call.1} parent=1 // loop_footer_branch
      %20 = sbr.rel target = $region3
    $region8: #{tpu_custom_call.1} parent=1 // loop_exit
      _
    %1138 = vsyncpa [#allocation5], 1
    %s1139 = scalar_lea.sflag [#allocation5], 1
    %1140 = vsyncpa %s1139, 1
    %1141 = vsyncpa [#allocation8], 1
    %1142 = vsyncpa [#allocation11], 1
    %1143 = vsyncpa [#allocation6], 1
    %s1144 = scalar_lea.sflag [#allocation6], 1
    %1145 = vsyncpa %s1144, 1

</llo_original>
